<compile_context>
chip_gen: v6e
topology: v6e:2x2x1
jax: 0.10.0
libtpu: 0.0.40
codegen_flags: <defaults>
</compile_context>

<pallas_src>
import functools

import jax
import jax.numpy as jnp
from jax.experimental import pallas as pl
from jax.experimental.pallas import tpu as pltpu

MATMUL_DTYPE = jnp.bfloat16   # MXU input dtype (f32 accumulate)
LN_EPS = 1e-5
NEG_BIG = -1e9                # finite mask value (bf16-safe; exp underflows to 0)


def _row_tile(m, max_tile=256):
    """Largest row tile (multiple of 8, <= max_tile) dividing m with >=2 steps.

    Keeps per-call VMEM (2 double-buffered IO tiles + resident weights) far
    below the scoped VMEM default on v5e/v6e (128 MiB) and v7x (64 MiB).
    """
    for t in (256, 128, 64, 32, 16, 8):
        if t <= max_tile and m % t == 0 and m // t >= 2:
            return t
    return m


# ----------------------------- Pallas kernels -----------------------------

def _qkv_kernel(x_ref, w_ref, b_ref, o_ref):
    # fused Q/K/V projection: y = x @ Wqkv + bqkv  (scaling pre-folded into Q)
    o_ref[...] = (
        jnp.dot(x_ref[...].astype(MATMUL_DTYPE), w_ref[...],
                preferred_element_type=jnp.float32) + b_ref[...])


def qkv_proj(x2d, w_bf16, b):
    M, Cin = x2d.shape
    Cout = w_bf16.shape[1]
    tm = _row_tile(M)
    return pl.pallas_call(
        _qkv_kernel,
        out_shape=jax.ShapeDtypeStruct((M, Cout), jnp.float32),
        grid=(M // tm,),
        in_specs=[
            pl.BlockSpec((tm, Cin), lambda i: (i, 0)),
            pl.BlockSpec((Cin, Cout), lambda i: (0, 0)),
            pl.BlockSpec((1, Cout), lambda i: (0, 0)),
        ],
        out_specs=pl.BlockSpec((tm, Cout), lambda i: (i, 0)),
        compiler_params=pltpu.CompilerParams(dimension_semantics=("parallel",)),
    )(x2d, w_bf16, b.reshape(1, Cout))


def _attn_kernel(qkv_ref, bias_ref, o_ref, *, num_heads, head_dim):
    # blocks: qkv (1, N, 3C) f32, bias (1, H, N, N) bf16, out (1, N, C) f32.
    C = num_heads * head_dim
    qkv = qkv_ref[0].astype(MATMUL_DTYPE)          # (N, 3C)
    outs = []
    for h in range(num_heads):                     # static unroll over heads
        lo = h * head_dim
        hi = lo + head_dim
        q = qkv[:, lo:hi]                          # q already scaled
        k = qkv[:, C + lo:C + hi]
        v = qkv[:, 2 * C + lo:2 * C + hi]
        b = bias_ref[0, h].astype(jnp.float32)     # (N, N)
        s = jax.lax.dot_general(q, k, (((1,), (1,)), ((), ())),
                                preferred_element_type=jnp.float32) + b
        m = jnp.max(s, axis=-1, keepdims=True)
        p = jnp.exp(s - m)
        denom = jnp.sum(p, axis=-1, keepdims=True)
        p = p * pl.reciprocal(denom, approx=True)  # divide on EUP, off VALU path
        outs.append(jnp.dot(p.astype(MATMUL_DTYPE), v,
                            preferred_element_type=jnp.float32))
    o_ref[0] = jnp.concatenate(outs, axis=-1)      # one lane-dense store


def attention(qkv, bias_bf16, num_heads):
    B, N, C3 = qkv.shape
    C = C3 // 3
    H = num_heads
    return pl.pallas_call(
        functools.partial(_attn_kernel, num_heads=H, head_dim=C // H),
        out_shape=jax.ShapeDtypeStruct((B, N, C), jnp.float32),
        grid=(B,),
        in_specs=[
            pl.BlockSpec((1, N, C3), lambda b: (b, 0, 0)),
            pl.BlockSpec((1, H, N, N), lambda b: (b, 0, 0, 0)),
        ],
        out_specs=pl.BlockSpec((1, N, C), lambda b: (b, 0, 0)),
        compiler_params=pltpu.CompilerParams(dimension_semantics=("parallel",)),
    )(qkv, bias_bf16)


def _linear_res_ln_kernel(x_ref, res_ref, w_ref, b_ref, g_ref, be_ref, o_ref, *, eps):
    # out-projection + residual add + LayerNorm, all fused.
    y = jnp.dot(x_ref[...].astype(MATMUL_DTYPE), w_ref[...],
                preferred_element_type=jnp.float32) + b_ref[...]
    z = res_ref[...] + y
    mu = jnp.mean(z, axis=-1, keepdims=True)
    zc = z - mu
    var = jnp.mean(zc * zc, axis=-1, keepdims=True)
    o_ref[...] = zc * jax.lax.rsqrt(var + eps) * g_ref[...] + be_ref[...]


def linear_residual_ln(x2d, res2d, w_bf16, b, gamma, beta):
    M, Cin = x2d.shape
    Cout = w_bf16.shape[1]
    tm = _row_tile(M)
    return pl.pallas_call(
        functools.partial(_linear_res_ln_kernel, eps=LN_EPS),
        out_shape=jax.ShapeDtypeStruct((M, Cout), jnp.float32),
        grid=(M // tm,),
        in_specs=[
            pl.BlockSpec((tm, Cin), lambda i: (i, 0)),
            pl.BlockSpec((tm, Cout), lambda i: (i, 0)),
            pl.BlockSpec((Cin, Cout), lambda i: (0, 0)),
            pl.BlockSpec((1, Cout), lambda i: (0, 0)),
            pl.BlockSpec((1, Cout), lambda i: (0, 0)),
            pl.BlockSpec((1, Cout), lambda i: (0, 0)),
        ],
        out_specs=pl.BlockSpec((tm, Cout), lambda i: (i, 0)),
        compiler_params=pltpu.CompilerParams(dimension_semantics=("parallel",)),
    )(x2d, res2d, w_bf16, b.reshape(1, Cout),
      gamma.reshape(1, Cout), beta.reshape(1, Cout))


def _ffn_res_ln_kernel(x_ref, w1_ref, b1_ref, w2_ref, b2_ref, g_ref, be_ref, o_ref, *, eps):
    # fc1 -> gelu -> fc2 -> +residual(x) -> LayerNorm; hidden stays in VMEM/vregs.
    x = x_ref[...]
    h = jnp.dot(x.astype(MATMUL_DTYPE), w1_ref[...],
                preferred_element_type=jnp.float32) + b1_ref[...]
    h = jax.nn.gelu(h, approximate=False)          # exact erf gelu == F.gelu
    y = jnp.dot(h.astype(MATMUL_DTYPE), w2_ref[...],
                preferred_element_type=jnp.float32) + b2_ref[...]
    z = x + y
    mu = jnp.mean(z, axis=-1, keepdims=True)
    zc = z - mu
    var = jnp.mean(zc * zc, axis=-1, keepdims=True)
    o_ref[...] = zc * jax.lax.rsqrt(var + eps) * g_ref[...] + be_ref[...]


def ffn_residual_ln(x2d, w1_bf16, b1, w2_bf16, b2, gamma, beta):
    M, C = x2d.shape
    Fd = w1_bf16.shape[1]
    tm = _row_tile(M)
    return pl.pallas_call(
        functools.partial(_ffn_res_ln_kernel, eps=LN_EPS),
        out_shape=jax.ShapeDtypeStruct((M, C), jnp.float32),
        grid=(M // tm,),
        in_specs=[
            pl.BlockSpec((tm, C), lambda i: (i, 0)),
            pl.BlockSpec((C, Fd), lambda i: (0, 0)),
            pl.BlockSpec((1, Fd), lambda i: (0, 0)),
            pl.BlockSpec((Fd, C), lambda i: (0, 0)),
            pl.BlockSpec((1, C), lambda i: (0, 0)),
            pl.BlockSpec((1, C), lambda i: (0, 0)),
            pl.BlockSpec((1, C), lambda i: (0, 0)),
        ],
        out_specs=pl.BlockSpec((tm, C), lambda i: (i, 0)),
        compiler_params=pltpu.CompilerParams(dimension_semantics=("parallel",)),
    )(x2d, w1_bf16, b1.reshape(1, Fd), w2_bf16, b2.reshape(1, C),
      gamma.reshape(1, C), beta.reshape(1, C))


def _lm_head_kernel(x_ref, w1_ref, b1_ref, g_ref, be_ref, w2_ref, hb_ref, o_ref, *, eps):
    # layer_norm(gelu(W_lm x)) @ embed_out(+128-lane pad) + learned bias, fused.
    h = jnp.dot(x_ref[...].astype(MATMUL_DTYPE), w1_ref[...],
                preferred_element_type=jnp.float32) + b1_ref[...]
    h = jax.nn.gelu(h, approximate=False)
    mu = jnp.mean(h, axis=-1, keepdims=True)
    hc = h - mu
    var = jnp.mean(hc * hc, axis=-1, keepdims=True)
    hn = hc * jax.lax.rsqrt(var + eps) * g_ref[...] + be_ref[...]
    o_ref[...] = (jnp.dot(hn.astype(MATMUL_DTYPE), w2_ref[...],
                          preferred_element_type=jnp.float32) + hb_ref[...])


def lm_head(x2d, w1_bf16, b1, gamma, beta, w2pad_bf16, head_bias_pad):
    M, C = x2d.shape
    Np = w2pad_bf16.shape[1]
    tm = _row_tile(M)
    return pl.pallas_call(
        functools.partial(_lm_head_kernel, eps=LN_EPS),
        out_shape=jax.ShapeDtypeStruct((M, Np), jnp.float32),
        grid=(M // tm,),
        in_specs=[
            pl.BlockSpec((tm, C), lambda i: (i, 0)),
            pl.BlockSpec((C, C), lambda i: (0, 0)),
            pl.BlockSpec((1, C), lambda i: (0, 0)),
            pl.BlockSpec((1, C), lambda i: (0, 0)),
            pl.BlockSpec((1, C), lambda i: (0, 0)),
            pl.BlockSpec((C, Np), lambda i: (0, 0)),
            pl.BlockSpec((1, Np), lambda i: (0, 0)),
        ],
        out_specs=pl.BlockSpec((tm, Np), lambda i: (i, 0)),
        compiler_params=pltpu.CompilerParams(dimension_semantics=("parallel",)),
    )(x2d, w1_bf16, b1.reshape(1, C), gamma.reshape(1, C), beta.reshape(1, C),
      w2pad_bf16, head_bias_pad)


# ----------------------------- model glue -----------------------------

def encoder_layer(x, bias_bf16, lp, num_heads):
    # post-LayerNorm Graphormer encoder layer (pre_layernorm=False), dropout=0
    B, N, C = x.shape
    x2 = x.reshape(B * N, C)
    qkv = qkv_proj(x2, lp["qkv_w"], lp["qkv_b"])                       # [M, 3C]
    attn_o = attention(qkv.reshape(B, N, 3 * C), bias_bf16, num_heads)  # [B,N,C]
    x2 = linear_residual_ln(attn_o.reshape(B * N, C), x2,
                            lp["out_w"], lp["out_b"], lp["ln1_g"], lp["ln1_b"])
    x2 = ffn_residual_ln(x2, lp["fc1_w"], lp["fc1_b"], lp["fc2_w"], lp["fc2_b"],
                         lp["ln2_g"], lp["ln2_b"])
    return x2.reshape(B, N, C)


def graphormer_encoder_forward(params, batched_data):
    x_tok = batched_data["x"]                        # [B, T, Fn] int32
    in_deg = batched_data["in_degree"]               # [B, T]     int32
    out_deg = batched_data["out_degree"]             # [B, T]     int32
    attn_bias_in = batched_data["attn_bias"]         # [B, T+1, T+1] f32
    spatial_pos = batched_data["spatial_pos"]        # [B, T, T]  int32
    attn_edge_type = batched_data["attn_edge_type"]  # [B, T, T, Fe] int32

    B, T, _ = x_tok.shape
    H = params["num_heads"]
    C = params["embed_dim"]
    T1 = T + 1

    # padding mask (key padding); graph token never padded
    padding_mask = (x_tok[:, :, 0] == 0)
    padding_mask = jnp.concatenate(
        [jnp.zeros((B, 1), dtype=bool), padding_mask], axis=1)          # [B, T+1]

    # ----- GraphNodeFeature (plain-JAX embedding gathers) -----
    node_feat = params["atom_emb"][x_tok].sum(axis=-2)                  # [B, T, C]
    node_feat = node_feat + params["in_deg_emb"][in_deg] + params["out_deg_emb"][out_deg]
    graph_tok = jnp.broadcast_to(params["graph_token"][None, :, :], (B, 1, C))
    x = jnp.concatenate([graph_tok, node_feat], axis=1)                 # [B, T+1, C]

    # ----- GraphAttnBias (single-hop branch), fused assembly -----
    # TODO(synk): 'multi_hop' edge_type branch (edge_dis_encoder bmm chain) not implemented.
    # attn_bias_in is added twice in the reference code -> fold into 2*attn_bias_in.
    ab2 = 2.0 * attn_bias_in                                            # [B, T1, T1]
    sp_bias = jnp.transpose(params["spatial_emb"][spatial_pos], (0, 3, 1, 2))   # [B,H,T,T]
    edge_bias = jnp.transpose(
        params["edge_emb"][attn_edge_type].mean(axis=-2), (0, 3, 1, 2))         # [B,H,T,T]
    tvd = params["graph_token_vd"].reshape(1, H, 1, 1)
    inner = ab2[:, None, 1:, 1:] + sp_bias + edge_bias                  # [B,H,T,T]
    col0 = ab2[:, None, 1:, 0:1] + tvd                                  # [B,H,T,1]
    row0 = ab2[:, None, 0:1, :] + tvd                                   # [B,H,1,T1]
    gb = jnp.concatenate([row0, jnp.concatenate([col0, inner], axis=3)], axis=2)
    # fold key-padding mask into the bias (finite large negative; exp underflows to 0)
    gb = jnp.where(padding_mask[:, None, None, :], jnp.float32(NEG_BIG), gb)
    gb_bf16 = gb.astype(jnp.bfloat16)   # halves per-layer HBM bias stream

    # ----- transformer layers (inner_states[-1] == output of last layer) -----
    for lp in params["layers"]:
        x = encoder_layer(x, gb_bf16, lp, H)

    # ----- LM head: layer_norm(gelu(W_lm x)) -> embed_out -> + learned bias -----
    ncls = params["num_classes"]
    logits_pad = lm_head(x.reshape(B * T1, C), params["lm_w"], params["lm_b"],
                         params["lm_ln_g"], params["lm_ln_b"],
                         params["embed_out_w_pad"], params["head_bias_pad"])
    return logits_pad[:, :ncls].reshape(B, T1, ncls)


# ----------------------------- params -----------------------------

def init_params(key, net_params, data_params):
    """PyTorch-equivalent (f32, unfused) parameters."""
    C = net_params["encoder_embed_dim"]
    Fd = net_params["encoder_ffn_embed_dim"]
    H = net_params["encoder_attention_heads"]
    L = net_params["encoder_layers"]
    ncls = data_params["num_classes"]
    keys = iter(jax.random.split(key, 256))

    def nrm(shape, scale=0.02):
        return (scale * jax.random.normal(next(keys), shape)).astype(jnp.float32)

    def emb(n, d, pad0=True):
        w = nrm((n, d))
        if pad0:
            w = w.at[0].set(0.0)   # nn.Embedding padding_idx=0 row is zero
        return w

    params = dict(
        num_heads=H, embed_dim=C, num_classes=ncls,
        atom_emb=emb(data_params["num_atoms"] + 1, C),
        in_deg_emb=emb(data_params["num_in_degree"], C),
        out_deg_emb=emb(data_params["num_out_degree"], C),
        graph_token=nrm((1, C)),
        spatial_emb=emb(data_params["num_spatial"], H),
        edge_emb=emb(data_params["num_edges"] + 1, H),
        graph_token_vd=nrm((1, H)),
        layers=[],
        lm_w=nrm((C, C)), lm_b=jnp.zeros((C,), jnp.float32),
        lm_ln_g=jnp.ones((C,), jnp.float32), lm_ln_b=jnp.zeros((C,), jnp.float32),
        embed_out_w=nrm((C, ncls)),
        lm_output_learned_bias=jnp.zeros((1,), jnp.float32),
    )
    for _ in range(L):
        params["layers"].append(dict(
            attn=dict(q_w=nrm((C, C)), q_b=nrm((C,)),
                      k_w=nrm((C, C)), k_b=nrm((C,)),
                      v_w=nrm((C, C)), v_b=nrm((C,)),
                      out_w=nrm((C, C)), out_b=nrm((C,))),
            ln1_g=jnp.ones((C,), jnp.float32), ln1_b=jnp.zeros((C,), jnp.float32),
            fc1_w=nrm((C, Fd)), fc1_b=nrm((Fd,)),
            fc2_w=nrm((Fd, C)), fc2_b=nrm((C,)),
            ln2_g=jnp.ones((C,), jnp.float32), ln2_b=jnp.zeros((C,), jnp.float32),
        ))
    return params


def prepare_params(raw):
    """Inference-time prep: fuse QKV (fold 1/sqrt(Dh) into Q), cast matmul
    weights to bf16, pad the classifier output to a 128-lane multiple and fold
    the learned scalar output bias into a bias row."""
    H = raw["num_heads"]
    C = raw["embed_dim"]
    Dh = C // H
    scaling = Dh ** -0.5

    def bf(x):
        return x.astype(MATMUL_DTYPE)

    layers = []
    for lp in raw["layers"]:
        a = lp["attn"]
        qkv_w = jnp.concatenate([a["q_w"] * scaling, a["k_w"], a["v_w"]], axis=1)
        qkv_b = jnp.concatenate([a["q_b"] * scaling, a["k_b"], a["v_b"]], axis=0)
        layers.append(dict(
            qkv_w=bf(qkv_w), qkv_b=qkv_b,
            out_w=bf(a["out_w"]), out_b=a["out_b"],
            ln1_g=lp["ln1_g"], ln1_b=lp["ln1_b"],
            fc1_w=bf(lp["fc1_w"]), fc1_b=lp["fc1_b"],
            fc2_w=bf(lp["fc2_w"]), fc2_b=lp["fc2_b"],
            ln2_g=lp["ln2_g"], ln2_b=lp["ln2_b"],
        ))

    ncls = raw["num_classes"]
    ncls_pad = max(128, ((ncls + 127) // 128) * 128)
    w2pad = jnp.zeros((C, ncls_pad), jnp.float32).at[:, :ncls].set(raw["embed_out_w"])
    head_bias = jnp.full((1, ncls_pad), raw["lm_output_learned_bias"][0],
                         dtype=jnp.float32)

    return dict(
        num_heads=H, embed_dim=C, num_classes=ncls,
        atom_emb=raw["atom_emb"], in_deg_emb=raw["in_deg_emb"],
        out_deg_emb=raw["out_deg_emb"], graph_token=raw["graph_token"],
        spatial_emb=raw["spatial_emb"], edge_emb=raw["edge_emb"],
        graph_token_vd=raw["graph_token_vd"],
        layers=layers,
        lm_w=bf(raw["lm_w"]), lm_b=raw["lm_b"],
        lm_ln_g=raw["lm_ln_g"], lm_ln_b=raw["lm_ln_b"],
        embed_out_w_pad=bf(w2pad), head_bias_pad=head_bias,
    )


# ----------------------------- main -----------------------------

if __name__ == "__main__":
    net_params = dict(
        encoder_layers=2, encoder_embed_dim=32, encoder_ffn_embed_dim=64,
        encoder_attention_heads=4, dropout=0.0, attention_dropout=0.0,
        act_dropout=0.0, encoder_normalize_before=False, pre_layernorm=False,
        apply_graphormer_init=True, activation_fn="gelu",
        share_encoder_input_output_embed=False, remove_head=False,
    )
    data_params = dict(
        max_nodes=16, num_atoms=64, num_in_degree=16, num_out_degree=16,
        num_edges=32, num_spatial=16, num_edge_dis=8, edge_type="single_hop",
        multi_hop_max_dist=5, num_classes=10,
    )

    key = jax.random.PRNGKey(0)
    kp, kd = jax.random.split(key)
    raw_params = init_params(kp, net_params, data_params)
    params = prepare_params(raw_params)

    B, T, Fn, Fe = 2, 7, 2, 1
    kd1, kd2, kd3, kd4, kd5 = jax.random.split(kd, 5)
    x_tok = jax.random.randint(kd1, (B, T, Fn), 1, data_params["num_atoms"] + 1,
                               dtype=jnp.int32)
    node_valid = jnp.ones((B, T), dtype=bool).at[1, 5:].set(False)  # pad 2 nodes of graph 1
    x_tok = jnp.where(node_valid[:, :, None], x_tok, 0)
    in_deg = jnp.where(node_valid,
                       jax.random.randint(kd2, (B, T), 1, data_params["num_in_degree"],
                                          dtype=jnp.int32), 0)
    out_deg = jnp.where(node_valid,
                        jax.random.randint(kd3, (B, T), 1, data_params["num_out_degree"],
                                           dtype=jnp.int32), 0)
    pair_valid = node_valid[:, :, None] & node_valid[:, None, :]
    spatial_pos = jnp.where(pair_valid,
                            jax.random.randint(kd4, (B, T, T), 1, data_params["num_spatial"],
                                               dtype=jnp.int32), 0)
    attn_edge_type = jnp.where(pair_valid[..., None],
                               jax.random.randint(kd5, (B, T, T, Fe), 1,
                                                  data_params["num_edges"] + 1,
                                                  dtype=jnp.int32), 0)
    attn_bias = jnp.zeros((B, T + 1, T + 1), jnp.float32)

    batched_data = dict(x=x_tok, in_degree=in_deg, out_degree=out_deg,
                        attn_bias=attn_bias, spatial_pos=spatial_pos,
                        attn_edge_type=attn_edge_type)

    out = graphormer_encoder_forward(params, batched_data)
    out = jax.block_until_ready(out)
    assert out.shape == (B, T + 1, data_params["num_classes"])
    assert bool(jnp.all(jnp.isfinite(out)))
    print("KERNEL_OK")
</pallas_src>

<mosaic_0001>
module attributes {stable_mosaic.version = 11 : i64} {
  func.func @_qkv_kernel(%arg0: i32, %arg1: memref<8x32xf32, #tpu.memory_space<vmem>>, %arg2: memref<32x96xbf16, #tpu.memory_space<vmem>>, %arg3: memref<1x96xf32, #tpu.memory_space<vmem>>, %arg4: memref<8x96xf32, #tpu.memory_space<vmem>>) attributes {dimension_semantics = [#tpu.dimension_semantics<parallel>], iteration_bounds = array<i64: 2>, scalar_prefetch = 0 : i64, scratch_operands = 0 : i64, tpu.core_type = #tpu.core_type<tc>, window_params = [{transform_indices = @transform_0, window_bounds = array<i64: 8, 32>}, {pipeline_mode = #tpu.pipeline_mode<synchronous>, transform_indices = @transform_1, window_bounds = array<i64: 32, 96>}, {pipeline_mode = #tpu.pipeline_mode<synchronous>, transform_indices = @transform_2, window_bounds = array<i64: 1, 96>}, {transform_indices = @transform_3, window_bounds = array<i64: 8, 96>}]} {
    %c0 = arith.constant 0 : index
    %c0_0 = arith.constant 0 : index
    %0 = vector.load %arg1[%c0, %c0_0] : memref<8x32xf32, #tpu.memory_space<vmem>>, vector<8x32xf32>
    %1 = arith.truncf %0 : vector<8x32xf32> to vector<8x32xbf16>
    %c0_1 = arith.constant 0 : index
    %c0_2 = arith.constant 0 : index
    %2 = vector.load %arg2[%c0_1, %c0_2] : memref<32x96xbf16, #tpu.memory_space<vmem>>, vector<32x96xbf16>
    %cst = arith.constant dense<0.000000e+00> : vector<8x96xf32>
    %3 = tpu.matmul %1, %2, %cst {dimension_numbers = #tpu.dot_dimension_numbers<[1], [0], [0], [1], [0, 0, 1, 1], [], []>} : vector<8x32xbf16>, vector<32x96xbf16>, vector<8x96xf32> -> vector<8x96xf32>
    %c0_3 = arith.constant 0 : index
    %c0_4 = arith.constant 0 : index
    %4 = vector.load %arg3[%c0_3, %c0_4] : memref<1x96xf32, #tpu.memory_space<vmem>>, vector<1x96xf32>
    %5 = vector.broadcast %4 : vector<1x96xf32> to vector<8x96xf32>
    %6 = arith.addf %3, %5 : vector<8x96xf32>
    %c0_5 = arith.constant 0 : index
    %c0_6 = arith.constant 0 : index
    %7 = vector.load %arg4[%c0_5, %c0_6] : memref<8x96xf32, #tpu.memory_space<vmem>>, vector<8x96xf32>
    tpu.vector_store %arg4[%c0_5, %c0_6], %6 {strides = array<i32>} : memref<8x96xf32, #tpu.memory_space<vmem>>, vector<8x96xf32>,
    return
  }
  func.func @transform_0(%arg0: i32) -> (i32, i32) {
    %c0_i32 = arith.constant 0 : i32
    %c0_i32_0 = arith.constant 0 : i32
    return %arg0, %c0_i32 : i32, i32
  }
  func.func @transform_1(%arg0: i32) -> (i32, i32) {
    %c0_i32 = arith.constant 0 : i32
    %c0_i32_0 = arith.constant 0 : i32
    %c0_i32_1 = arith.constant 0 : i32
    return %c0_i32, %c0_i32_0 : i32, i32
  }
  func.func @transform_2(%arg0: i32) -> (i32, i32) {
    %c0_i32 = arith.constant 0 : i32
    %c0_i32_0 = arith.constant 0 : i32
    %c0_i32_1 = arith.constant 0 : i32
    return %c0_i32, %c0_i32_0 : i32, i32
  }
  func.func @transform_3(%arg0: i32) -> (i32, i32) {
    %c0_i32 = arith.constant 0 : i32
    %c0_i32_0 = arith.constant 0 : i32
    return %arg0, %c0_i32 : i32, i32
  }
}

</mosaic_0001>

<llo_original>
// kernel: tpu_custom_call.1
$region0: #{tpu_custom_call.1}
  #allocation0 [shape = 'u32[]', space=smem, size = 0x4, offset = 0x4, fixed_abs, tag = 'smem constant byte address 0x4 - core index']
  #allocation1 [shape = 'u32[144,128]{1,0:T(1,128)}', space=vmem, size = 0x12000, scoped, tag = 'internal scratch']
  %s0 = inlined_call_operand.hbm [shape: f32[16,32], index: 0, kind: input, shape index: {}]
  %s1 = inlined_call_operand.hbm [shape: bf16[32,96], index: 1, kind: input, shape index: {}]
  %s2 = inlined_call_operand.vmem [shape: f32[1,96], index: 2, kind: input, shape index: {}]
  %s3 = inlined_call_operand.hbm [shape: f32[16,96], index: 3, kind: output, shape index: {}]
  %s4 = sld [smem:[#allocation0]]
  $region53: #{tpu_custom_call.1} parent=0
    _
  %s6 = ssub.s32 1, %s4
  %s7 = scalar_select 0, %s6, %s4
  $region1: #{tpu_custom_call.1} parent=0
    #allocation2 [shape = 'u8[8192]{0}', space=vmem, size = 0x2000, scoped, tag = 'input window, operand 0']
    #allocation3 [shape = 's32[2]{0}', space=sflag, size = 0x8, scoped, tag = 'scoped memory for tpu_custom_call.1']
    #allocation4 [shape = 's32[2]{0}', space=sflag, size = 0x8, scoped, tag = 'scoped memory for tpu_custom_call.1']
    #allocation5 [shape = 'u8[8192]{0}', space=vmem, size = 0x2000, scoped, tag = 'input window, operand 1, single buffered']
    #allocation6 [shape = 's32[1]{0}', space=sflag, size = 0x4, scoped, tag = 'scoped memory for tpu_custom_call.1']
    #allocation7 [shape = 'u8[8192]{0}', space=vmem, size = 0x2000, scoped, tag = 'output window, operand 0']
    %8 = vsyncpa [#allocation3], 0
    %s9 = scalar_lea.sflag [#allocation3], 1
    %10 = vsyncpa %s9, 0
    %11 = vsyncpa [#allocation6], 0
    %12 = vsyncpa [#allocation4], 0
    %s13 = scalar_lea.sflag [#allocation4], 1
    %14 = vsyncpa %s13, 0
    loop: start=0, step=1, limit=4
    $region2: #{tpu_custom_call.1} parent=1 // loop_pre_header
      _
    $region3: #{tpu_custom_call.1} parent=1 // loop_header
      %s16 = sphi 0, %s20
      %p17 = scmp.ge.s32.totalorder %s16, 4
      %s26 = sphi 0, %s28
      %s29 = sphi 0, %s26
      %s30 = sphi 0, %s29
      %s46 = sphi 0, %s30
      %s50 = sphi 0, %s50
      %s52 = sphi 0, %s50
      %s53 = sphi 0, %s52
      %s67 = sphi 0, %s53
      %s71 = sphi 0, %s71
      %s73 = sphi 0, %s71
      %s74 = sphi 0, %s73
      %s88 = sphi 0, %s74
      %s94 = sphi 0, %s96
      %s97 = sphi 0, %s94
      %s98 = sphi 0, %s97
      %s114 = sphi 0, %s98
    $region4: #{tpu_custom_call.1} parent=1 // loop_header_branch
      %19 = sbr.rel (%p17) target = $region8
    $region5: #{tpu_custom_call.1} parent=1 // loop_body
      %s21 = ssub.s32 %s16, 1
      %s22 = ssub.s32 %s16, 2
      %s23 = sadd.s32 %s16, 1
      %s24 = ssub.s32 %s16, %s23
      %p25 = scmp.eq.s32.totalorder %s24, 0
      %s27 = sadd.s32 %s26, 1
      %s28 = scalar_select %p25, %s26, %s27
      %p31 = pneg %p25
      %p32 = scmp.eq.s32.totalorder %s16, 1
      %p33 = por %p31, %p32
      %p34 = scmp.ne.s32.totalorder %s26, %s29
      %p35 = scmp.eq.s32.totalorder %s16, 0
      %p36 = por %p34, %p35
      %p37 = scmp.ne.s32.totalorder %s26, %s29
      %p38 = scmp.eq.s32.totalorder %s21, 1
      %p39 = por %p37, %p38
      %p40 = scmp.ne.s32.totalorder %s29, %s30
      %p41 = scmp.eq.s32.totalorder %s21, 0
      %p42 = por %p40, %p41
      %p43 = scmp.ne.s32.totalorder %s29, %s30
      %p44 = scmp.eq.s32.totalorder %s22, 1
      %p45 = por %p43, %p44
      %p47 = scmp.ne.s32.totalorder %s30, %s46
      %p48 = scmp.eq.s32.totalorder %s22, 0
      %p49 = por %p47, %p48
      %s51 = sadd.s32 %s50, 1
      %p54 = scmp.eq.s32.totalorder %s16, 1
      %p55 = scmp.ne.s32.totalorder %s50, %s52
      %p56 = scmp.eq.s32.totalorder %s16, 0
      %p57 = por %p55, %p56
      %p58 = scmp.ne.s32.totalorder %s50, %s52
      %p59 = scmp.eq.s32.totalorder %s21, 1
      %p60 = por %p58, %p59
      %p61 = scmp.ne.s32.totalorder %s52, %s53
      %p62 = scmp.eq.s32.totalorder %s21, 0
      %p63 = por %p61, %p62
      %p64 = scmp.ne.s32.totalorder %s52, %s53
      %p65 = scmp.eq.s32.totalorder %s22, 1
      %p66 = por %p64, %p65
      %p68 = scmp.ne.s32.totalorder %s53, %s67
      %p69 = scmp.eq.s32.totalorder %s22, 0
      %p70 = por %p68, %p69
      %s72 = sadd.s32 %s71, 1
      %p75 = scmp.eq.s32.totalorder %s16, 1
      %p76 = scmp.ne.s32.totalorder %s71, %s73
      %p77 = scmp.eq.s32.totalorder %s16, 0
      %p78 = por %p76, %p77
      %p79 = scmp.ne.s32.totalorder %s71, %s73
      %p80 = scmp.eq.s32.totalorder %s21, 1
      %p81 = por %p79, %p80
      %p82 = scmp.ne.s32.totalorder %s73, %s74
      %p83 = scmp.eq.s32.totalorder %s21, 0
      %p84 = por %p82, %p83
      %p85 = scmp.ne.s32.totalorder %s73, %s74
      %p86 = scmp.eq.s32.totalorder %s22, 1
      %p87 = por %p85, %p86
      %p89 = scmp.ne.s32.totalorder %s74, %s88
      %p90 = scmp.eq.s32.totalorder %s22, 0
      %p91 = por %p89, %p90
      %s92 = ssub.s32 %s16, %s23
      %p93 = scmp.eq.s32.totalorder %s92, 0
      %s95 = sadd.s32 %s94, 1
      %s96 = scalar_select %p93, %s94, %s95
      %p99 = pneg %p93
      %p100 = scmp.eq.s32.totalorder %s16, 1
      %p101 = por %p99, %p100
      %p102 = scmp.ne.s32.totalorder %s94, %s97
      %p103 = scmp.eq.s32.totalorder %s16, 0
      %p104 = por %p102, %p103
      %p105 = scmp.ne.s32.totalorder %s94, %s97
      %p106 = scmp.eq.s32.totalorder %s21, 1
      %p107 = por %p105, %p106
      %p108 = scmp.ne.s32.totalorder %s97, %s98
      %p109 = scmp.eq.s32.totalorder %s21, 0
      %p110 = por %p108, %p109
      %p111 = scmp.ne.s32.totalorder %s97, %s98
      %p112 = scmp.eq.s32.totalorder %s22, 1
      %p113 = por %p111, %p112
      %p115 = scmp.ne.s32.totalorder %s98, %s114
      %p116 = scmp.eq.s32.totalorder %s22, 0
      %p117 = por %p115, %p116
      %p118 = scmp.le.s32.totalorder 1, %s16
      %p119 = scmp.lt.s32.totalorder %s16, 3
      %p120 = pnand %p118, %p119
      %p121 = pneg %p120
      // Predicated region
      $region9: #{tpu_custom_call.1} parent=5 // pred_check
        _
      $region10: #{tpu_custom_call.1} parent=5 // pred_check_branch
        %123 = sbr.rel (%p120) target = $region12
      $region11: #{tpu_custom_call.1} parent=5 // pred_region
        %s124 = ssub.s32 %s16, 1
        // Predicated region
        $region13: #{tpu_custom_call.1} parent=11 // pred_check
          %p125 = pneg %p63
        $region14: #{tpu_custom_call.1} parent=11 // pred_check_branch
          %127 = sbr.rel (%p125) target = $region16
        $region15: #{tpu_custom_call.1} parent=11 // pred_region
          %s129 = ssub.s32 256, 256
          %130 = vsyncadd [#allocation6], %s129
          %s131 = sshll.u32 [#allocation5], 4
          %s132 = int_to_ptr.vmem [resolvable:$true] %s131
          %137 = dma.hbm_to_vmem [thread:$0]  %s1, 256, %s132, [#allocation6], 64, 64, 4
        $region16: #{tpu_custom_call.1} parent=11 // pred_fallthru
          _
        // Predicated region
        $region17: #{tpu_custom_call.1} parent=11 // pred_check
          %p138 = pneg %p84
        $region18: #{tpu_custom_call.1} parent=11 // pred_check_branch
          %140 = sbr.rel (%p138) target = $region20
        $region19: #{tpu_custom_call.1} parent=11 // pred_region
          _
        $region20: #{tpu_custom_call.1} parent=11 // pred_fallthru
          _
      $region12: #{tpu_custom_call.1} parent=5 // pred_fallthru
        _
      %p141 = scmp.lt.s32.totalorder %s16, 2
      // Predicated region
      $region21: #{tpu_custom_call.1} parent=5 // pred_check
        %p142 = pneg %p141
      $region22: #{tpu_custom_call.1} parent=5 // pred_check_branch
        %144 = sbr.rel (%p142) target = $region24
      $region23: #{tpu_custom_call.1} parent=5 // pred_region
        // Predicated region
        $region25: #{tpu_custom_call.1} parent=23 // pred_check
          %p145 = pneg %p36
        $region26: #{tpu_custom_call.1} parent=23 // pred_check_branch
          %147 = sbr.rel (%p145) target = $region28
        $region27: #{tpu_custom_call.1} parent=23 // pred_region
          %s148 = sand.u32 %s26, 1
          %s149 = scalar_lea.sflag [#allocation3], %s148
          %s150 = sand.u32 %s26, 1
          %s151 = smul.addr %s150, 8
          %s152 = scalar_lea.vmem [#allocation2], %s151
          %s154 = ssub.s32 128, 128
          %155 = vsyncadd %s149, %s154
          %s156 = smul.addr %s16, 128
          %s157 = scalar_lea.hbm %s0, %s156
          %s159 = sshll.u32 %s152, 4
          %s160 = int_to_ptr.vmem [resolvable:$true] %s159
          %162 = dma.hbm_to_vmem [thread:$0]  %s157, 128, %s160, %s149
        $region28: #{tpu_custom_call.1} parent=23 // pred_fallthru
          _
      $region24: #{tpu_custom_call.1} parent=5 // pred_fallthru
        _
      %p163 = scmp.le.s32.totalorder 1, %s16
      %p164 = scmp.lt.s32.totalorder %s16, 3
      %p165 = pnand %p163, %p164
      %p166 = pneg %p165
      // Predicated region
      $region29: #{tpu_custom_call.1} parent=5 // pred_check
        _
      $region30: #{tpu_custom_call.1} parent=5 // pred_check_branch
        %168 = sbr.rel (%p165) target = $region32
      $region31: #{tpu_custom_call.1} parent=5 // pred_region
        %s169 = ssub.s32 %s16, 1
        %s170 = sand.u32 %s29, 1
        %s171 = scalar_lea.sflag [#allocation3], %s170
        %s172 = sand.u32 %s29, 1
        %s173 = smul.addr %s172, 8
        %s174 = scalar_lea.vmem [#allocation2], %s173
        // Predicated region
        $region33: #{tpu_custom_call.1} parent=31 // pred_check
          %p175 = pneg %p42
        $region34: #{tpu_custom_call.1} parent=31 // pred_check_branch
          %177 = sbr.rel (%p175) target = $region36
        $region35: #{tpu_custom_call.1} parent=31 // pred_region
          %178 = dma.done %s171, 128
        $region36: #{tpu_custom_call.1} parent=31 // pred_fallthru
          _
        // Predicated region
        $region37: #{tpu_custom_call.1} parent=31 // pred_check
          %p179 = pneg %p63
        $region38: #{tpu_custom_call.1} parent=31 // pred_check_branch
          %181 = sbr.rel (%p179) target = $region40
        $region39: #{tpu_custom_call.1} parent=31 // pred_region
          %182 = dma.done [#allocation6], 256
        $region40: #{tpu_custom_call.1} parent=31 // pred_fallthru
          _
        %s183 = sand.u32 %s29, 1
        %s184 = scalar_lea.sflag [#allocation3], %s183
        %s185 = sand.u32 %s29, 1
        %s186 = smul.addr %s185, 8
        %s187 = scalar_lea.vmem [#allocation2], %s186
        %p188 = pneg %p42
        %p189 = pneg %p39
        %p190 = pneg %p63
        %p191 = pneg %p60
        %p192 = pneg %p84
        %p193 = pneg %p81
        %p194 = pneg %p110
        %p195 = pneg %p107
        %s196 = sand.u32 %s97, 1
        %s197 = scalar_lea.sflag [#allocation4], %s196
        %s198 = sand.u32 %s97, 1
        %s199 = smul.addr %s198, 8
        %s200 = scalar_lea.vmem [#allocation7], %s199
        %v202 = vld [vmem:[%s174] sm:$0xff]
        %v203 = vpack.c.bf16 %v202, %v202
        %v204 = vld [vmem:[#allocation5] sm:$0xf]
        %v205 = vld [vmem:[#allocation5 + $0x4] sm:$0xf]
        %v206 = vld [vmem:[#allocation5 + $0x8] sm:$0xf]
        %v207 = vld [vmem:[#allocation5 + $0xc] sm:$0xf]
        %v208 = vld [vmem:[%s2] sm:$0x1]
        %v210 = vlaneseq
        %v211 = vshrl.u32 %v210, 7
        %v212 = vsub.s32 0, %v211
        %v213 = vrot.slane %v208, %v212
        %v219 = vunpack.c.l.b16 %v204
        %v220 = vunpack.c.l.b16 %v205
        %v221 = vunpack.c.l.b16 %v206
        %v222 = vunpack.c.l.b16 %v207
        %v223 = vpack.c.b16 %v220, %v219
        %v224 = vpack.c.b16 %v222, %v221
        %vm227 = vcmask 261120
        %v229 = vsel %vm227, %v203, 0
        %231 = vmatprep.subr.bf16.mxu0 0
        %232 = vmatpush1.bf16.msra.mxu0 0
        %233 = vmatprep.subr.bf16.mxu0 0
        %234 = vmatpush1.bf16.msra.mxu0 0
        %235 = vmatprep.subr.bf16.mxu0 0
        %236 = vmatpush1.bf16.msra.mxu0 0
        %237 = vmatprep.subr.bf16.mxu0 0
        %238 = vmatpush1.bf16.msra.mxu0 0
        %239 = vmatprep.subr.bf16.mxu0 0
        %240 = vmatpush1.bf16.msra.mxu0 0
        %241 = vmatprep.subr.bf16.mxu0 0
        %242 = vmatpush1.bf16.msra.mxu0 0
        %243 = vmatprep.subr.bf16.mxu0 0
        %244 = vmatpush1.bf16.msra.mxu0 %v224
        %245 = vmatprep.subr.bf16.mxu0 0
        %246 = vmatpush1.bf16.msra.mxu0 %v223
        %247 = vmatprep.subr.bf16.mxu0 0
        %248 = vmatpush2.bf16.msra.mxu0 0
        %249 = vmatprep.subr.bf16.mxu0 0
        %250 = vmatpush2.bf16.msra.mxu0 0
        %251 = vmatprep.subr.bf16.mxu0 0
        %252 = vmatpush2.bf16.msra.mxu0 0
        %253 = vmatprep.subr.bf16.mxu0 0
        %254 = vmatpush2.bf16.msra.mxu0 0
        %255 = vmatprep.subr.bf16.mxu0 0
        %256 = vmatpush2.bf16.msra.mxu0 0
        %257 = vmatprep.subr.bf16.mxu0 0
        %258 = vmatpush2.bf16.msra.mxu0 0
        %259 = vmatprep.subr.bf16.mxu0 0
        %260 = vmatpush2.bf16.msra.mxu0 0
        %261 = vmatprep.subr.bf16.mxu0 0
        %262 = vmatpush2.bf16.msra.mxu0 0
        %263 = vmatprep.mubr.bf16.mxu0 0
        %264 = vmatmul.mubr.bf16.gmra.mxu0 %v229
        %v265 = vpop.f32.mrf.mxu0
        %v266 = vadd.f32 %v213, %v265
        %v267 = vpop.f32.mrf.mxu0
        %v268 = vpop.f32.mrf.mxu0
        %v269 = vpop.f32.mrf.mxu0
        %270 = vdwg.mxu0
        %vm271 = vcmask 785408
        %272 = vst.msk [vmem:[%s200] sm:$0xff] %vm271, %v266
        %s273 = sand.u32 %s97, 1
        %s274 = scalar_lea.sflag [#allocation4], %s273
        %s275 = sand.u32 %s97, 1
        %s276 = smul.addr %s275, 8
        %s277 = scalar_lea.vmem [#allocation7], %s276
        // Predicated region
        $region41: #{tpu_custom_call.1} parent=31 // pred_check
          %p278 = pneg %p107
        $region42: #{tpu_custom_call.1} parent=31 // pred_check_branch
          %280 = sbr.rel (%p278) target = $region44
        $region43: #{tpu_custom_call.1} parent=31 // pred_region
          %s282 = ssub.s32 128, 128
          %283 = vsyncadd %s274, %s282
          %s284 = smul.addr %s21, 128
          %s285 = scalar_lea.hbm %s3, %s284
          %s287 = sshll.u32 %s277, 4
          %s288 = int_to_ptr.vmem [resolvable:$true] %s287
          %290 = dma.vmem_to_hbm [thread:$0]  %s288, 128, %s285, %s274
        $region44: #{tpu_custom_call.1} parent=31 // pred_fallthru
          _
      $region32: #{tpu_custom_call.1} parent=5 // pred_fallthru
        _
      %p291 = scmp.le.s32.totalorder 2, %s16
      // Predicated region
      $region45: #{tpu_custom_call.1} parent=5 // pred_check
        %p292 = pneg %p291
      $region46: #{tpu_custom_call.1} parent=5 // pred_check_branch
        %294 = sbr.rel (%p292) target = $region48
      $region47: #{tpu_custom_call.1} parent=5 // pred_region
        %s295 = ssub.s32 %s16, 2
        // Predicated region
        $region49: #{tpu_custom_call.1} parent=47 // pred_check
          %p296 = pneg %p113
        $region50: #{tpu_custom_call.1} parent=47 // pred_check_branch
          %298 = sbr.rel (%p296) target = $region52
        $region51: #{tpu_custom_call.1} parent=47 // pred_region
          %s299 = sand.u32 %s98, 1
          %s300 = scalar_lea.sflag [#allocation4], %s299
          %s301 = sand.u32 %s98, 1
          %s302 = smul.addr %s301, 8
          %s303 = scalar_lea.vmem [#allocation7], %s302
          %304 = dma.done %s300, 128
        $region52: #{tpu_custom_call.1} parent=47 // pred_fallthru
          _
      $region48: #{tpu_custom_call.1} parent=5 // pred_fallthru
        _
    $region6: #{tpu_custom_call.1} parent=1 // loop_footer
      %s20 = sadd.s32 1, %s16
    $region7: #{tpu_custom_call.1} parent=1 // loop_footer_branch
      %15 = sbr.rel target = $region3
    $region8: #{tpu_custom_call.1} parent=1 // loop_exit
      _
    %305 = vsyncpa [#allocation3], 1
    %s306 = scalar_lea.sflag [#allocation3], 1
    %307 = vsyncpa %s306, 1
    %308 = vsyncpa [#allocation6], 1
    %309 = vsyncpa [#allocation4], 1
    %s310 = scalar_lea.sflag [#allocation4], 1
    %311 = vsyncpa %s310, 1

</llo_original>
